<compile_context>
chip_gen: v5e
topology: v5e:2x2
jax: 0.10.0
libtpu: 0.0.40
codegen_flags: <defaults>
</compile_context>

<pallas_src>
import jax
import jax.numpy as jnp
from jax import lax
from jax.experimental import pallas as pl
from jax.experimental.pallas import tpu as pltpu

_EPS = 1e-12  # torch.nn.functional.normalize default eps


def _round_up(x, m):
    return ((x + m - 1) // m) * m


# ---------------------------------------------------------------------------
# Kernels
# ---------------------------------------------------------------------------
def _make_x_normalize_kernel(max_logit_scale):
    """L2-normalize rows of x and fold in clamp(exp(log_logit_scale), max)."""
    def kernel(ls_ref, x_ref, o_ref):
        scale = jnp.minimum(jnp.exp(ls_ref[0]), max_logit_scale)
        v = x_ref[...]
        # rsqrt runs on the EUP (its own VLIW slot); equivalent to
        # v / max(sqrt(sumsq), eps) since rsqrt(max(sumsq, eps^2)) = 1/max(||v||, eps).
        inv = lax.rsqrt(jnp.maximum(jnp.sum(v * v, axis=-1, keepdims=True),
                                    _EPS * _EPS))
        o_ref[...] = v * (inv * scale)
    return kernel


def _w_normalize_kernel(w_ref, o_ref):
    v = w_ref[...]
    inv = lax.rsqrt(jnp.maximum(jnp.sum(v * v, axis=-1, keepdims=True),
                                _EPS * _EPS))
    o_ref[...] = v * inv


def _logits_kernel(xs_ref, wn_ref, o_ref):
    # Contract both operands on their last (lane) axis: W stays in its natural
    # (d_out, d_in) layout, no transpose is materialized before the MXU.
    o_ref[...] = lax.dot_general(
        xs_ref[...], wn_ref[...],
        dimension_numbers=(((1,), (1,)), ((), ())),
        preferred_element_type=jnp.float32,
    ).astype(o_ref.dtype)


# ---------------------------------------------------------------------------
# Wrapper
# ---------------------------------------------------------------------------
def two_heads_forward(x, w1, w2, log_logit_scale, max_logit_scale=1000.0,
                      *, bm=256, bn=256):
    """Pallas implementation of TwoHeads.forward.

    x:  (B, d_in) float32
    w1: (d_out_1, d_in) float32   (torch nn.Linear.weight layout)
    w2: (d_out_2, d_in) float32
    log_logit_scale: scalar float32
    bm, bn: batch / d_out tile sizes (clamped + aligned internally).
    """
    x = jnp.asarray(x, jnp.float32)
    w1 = jnp.asarray(w1, jnp.float32)
    w2 = jnp.asarray(w2, jnp.float32)
    B, d_in = x.shape
    d_out_1 = w1.shape[0]
    d_out_2 = w2.shape[0]
    N = d_out_1 + d_out_2

    # Lane-dense padding: feature axis -> multiple of 128 (lanes); rows -> tile.
    Dp = _round_up(d_in, 128)
    bm = min(bm, _round_up(B, 8))
    bn = min(bn, _round_up(N, 128))
    Bp = _round_up(B, bm)
    Np = _round_up(N, bn)

    ls = jnp.asarray(log_logit_scale, jnp.float32).reshape(1)

    xp = jnp.pad(x, ((0, Bp - B), (0, Dp - d_in)))
    wc = jnp.concatenate([w1, w2], axis=0)          # fuse the two heads
    wcp = jnp.pad(wc, ((0, Np - N), (0, Dp - d_in)))

    # 1) normalize + scale x once (grid over batch tiles only).
    xs = pl.pallas_call(
        _make_x_normalize_kernel(float(max_logit_scale)),
        out_shape=jax.ShapeDtypeStruct((Bp, Dp), jnp.float32),
        grid=(Bp // bm,),
        in_specs=[
            pl.BlockSpec(memory_space=pltpu.MemorySpace.SMEM),  # log_logit_scale
            pl.BlockSpec((bm, Dp), lambda i: (i, 0)),
        ],
        out_specs=pl.BlockSpec((bm, Dp), lambda i: (i, 0)),
        compiler_params=pltpu.CompilerParams(
            dimension_semantics=("parallel",)),
    )(ls, xp)

    # 2) normalize [W1; W2] rows exactly once (grid over d_out tiles only).
    wn = pl.pallas_call(
        _w_normalize_kernel,
        out_shape=jax.ShapeDtypeStruct((Np, Dp), jnp.float32),
        grid=(Np // bn,),
        in_specs=[pl.BlockSpec((bn, Dp), lambda j: (j, 0))],
        out_specs=pl.BlockSpec((bn, Dp), lambda j: (j, 0)),
        compiler_params=pltpu.CompilerParams(
            dimension_semantics=("parallel",)),
    )(wcp)

    # 3) one fused lane-dense matmul: (Bp, Dp) x (Np, Dp) -> (Bp, Np).
    logits = pl.pallas_call(
        _logits_kernel,
        out_shape=jax.ShapeDtypeStruct((Bp, Np), jnp.float32),
        grid=(Bp // bm, Np // bn),
        in_specs=[
            pl.BlockSpec((bm, Dp), lambda i, j: (i, 0)),
            pl.BlockSpec((bn, Dp), lambda i, j: (j, 0)),
        ],
        out_specs=pl.BlockSpec((bm, bn), lambda i, j: (i, j)),
        compiler_params=pltpu.CompilerParams(
            dimension_semantics=("parallel", "parallel")),
    )(xs, wn)

    logits_1 = logits[:B, :d_out_1]
    logits_2 = logits[:B, d_out_1:N]
    w1n = wn[:d_out_1, :d_in]
    w2n = wn[d_out_1:N, :d_in]
    return logits_1, logits_2, w1n, w2n


# ---------------------------------------------------------------------------
# Pure-JAX reference (torch semantics) + demo
# ---------------------------------------------------------------------------
def _reference(x, w1, w2, log_logit_scale, max_logit_scale=1000.0):
    def norm(v):
        n = jnp.sqrt(jnp.sum(v * v, axis=-1, keepdims=True))
        return v / jnp.maximum(n, _EPS)
    xn, w1n, w2n = norm(x), norm(w1), norm(w2)
    s = jnp.minimum(jnp.exp(log_logit_scale), max_logit_scale)
    return xn @ w1n.T * s, xn @ w2n.T * s, w1n, w2n


if __name__ == "__main__":
    # Small deterministic setup; bm=8 forces a multi-tile batch grid.
    B, d_in, d_out_1, d_out_2 = 24, 32, 16, 24

    key = jax.random.PRNGKey(0)
    kx, k1, k2 = jax.random.split(key, 3)
    x = jax.random.normal(kx, (B, d_in), dtype=jnp.float32)

    # nn.Linear(d_in, d_out, bias=False) weight shape: (d_out, d_in).
    bound = 1.0 / (d_in ** 0.5)
    w1 = jax.random.uniform(k1, (d_out_1, d_in), jnp.float32, -bound, bound)
    w2 = jax.random.uniform(k2, (d_out_2, d_in), jnp.float32, -bound, bound)

    log_logit_scale = jnp.float32(0.3)
    max_logit_scale = 1000.0

    outs = two_heads_forward(x, w1, w2, log_logit_scale, max_logit_scale,
                             bm=8, bn=256)
    outs = jax.block_until_ready(outs)

    refs = _reference(x, w1, w2, log_logit_scale, max_logit_scale)
    for o, r in zip(outs, refs):
        assert o.shape == r.shape and o.dtype == r.dtype
        assert float(jnp.max(jnp.abs(o - r))) < 1e-4

    print("KERNEL_OK")
</pallas_src>

<mosaic_0001>
module attributes {stable_mosaic.version = 11 : i64} {
  func.func @kernel(%arg0: i32, %arg1: memref<1xf32, #tpu.memory_space<smem>>, %arg2: memref<8x128xf32, #tpu.memory_space<vmem>>, %arg3: memref<8x128xf32, #tpu.memory_space<vmem>>) attributes {dimension_semantics = [#tpu.dimension_semantics<parallel>], iteration_bounds = array<i64: 3>, scalar_prefetch = 0 : i64, scratch_operands = 0 : i64, tpu.core_type = #tpu.core_type<tc>, window_params = [{transform_indices = @transform_0, window_bounds = array<i64: 1>}, {transform_indices = @transform_1, window_bounds = array<i64: 8, 128>}, {transform_indices = @transform_2, window_bounds = array<i64: 8, 128>}]} {
    %c0 = arith.constant 0 : index
    %0 = memref.load %arg1[%c0] : memref<1xf32, #tpu.memory_space<smem>>
    %1 = math.exp %0 : f32
    %cst = arith.constant 1.000000e+03 : f32
    %2 = arith.minimumf %1, %cst : f32
    %c0_0 = arith.constant 0 : index
    %c0_1 = arith.constant 0 : index
    %3 = vector.load %arg2[%c0_0, %c0_1] : memref<8x128xf32, #tpu.memory_space<vmem>>, vector<8x128xf32>
    %4 = arith.mulf %3, %3 : vector<8x128xf32>
    %cst_2 = arith.constant dense<0.000000e+00> : vector<8xf32>
    %5 = vector.multi_reduction <add>, %4, %cst_2 [1] : vector<8x128xf32> to vector<8xf32>
    %6 = vector.shape_cast %5 : vector<8xf32> to vector<8x1xf32>
    %cst_3 = arith.constant 1.000000e-24 : f32
    %7 = vector.broadcast %cst_3 : f32 to vector<8x1xf32>
    %8 = arith.maximumf %6, %7 : vector<8x1xf32>
    %9 = math.rsqrt %8 : vector<8x1xf32>
    %10 = vector.broadcast %2 : f32 to vector<8x1xf32>
    %11 = arith.mulf %9, %10 : vector<8x1xf32>
    %12 = vector.broadcast %11 : vector<8x1xf32> to vector<8x128xf32>
    %13 = arith.mulf %3, %12 : vector<8x128xf32>
    %c0_4 = arith.constant 0 : index
    %c0_5 = arith.constant 0 : index
    %14 = vector.load %arg3[%c0_4, %c0_5] : memref<8x128xf32, #tpu.memory_space<vmem>>, vector<8x128xf32>
    tpu.vector_store %arg3[%c0_4, %c0_5], %13 {strides = array<i32>} : memref<8x128xf32, #tpu.memory_space<vmem>>, vector<8x128xf32>,
    return
  }
  func.func @transform_0(%arg0: i32) -> i32 {
    %c0_i32 = arith.constant 0 : i32
    %c0_i32_0 = arith.constant 0 : i32
    return %c0_i32 : i32
  }
  func.func @transform_1(%arg0: i32) -> (i32, i32) {
    %c0_i32 = arith.constant 0 : i32
    %c0_i32_0 = arith.constant 0 : i32
    return %arg0, %c0_i32 : i32, i32
  }
  func.func @transform_2(%arg0: i32) -> (i32, i32) {
    %c0_i32 = arith.constant 0 : i32
    %c0_i32_0 = arith.constant 0 : i32
    return %arg0, %c0_i32 : i32, i32
  }
}

</mosaic_0001>

<llo_original>
// kernel: tpu_custom_call.1
$region0: #{tpu_custom_call.1}
  #allocation0 [shape = 'u32[]', space=smem, size = 0x4, offset = 0x4, fixed_abs, tag = 'smem constant byte address 0x4 - core index']
  #allocation1 [shape = 'u32[72,128]{1,0:T(1,128)}', space=vmem, size = 0x9000, scoped, tag = 'internal scratch']
  #allocation2 [shape = 'f32[1]{0:T(128)S(6)}', space=smem, size = 0x200, scoped, tag = 'scoped memory for tpu_custom_call.1']
  %s0 = inlined_call_operand.<no memory space> [shape: f32[1], index: 0, kind: input, shape index: {}]
  %s1 = inlined_call_operand.hbm [shape: f32[24,128], index: 1, kind: input, shape index: {}]
  %s2 = inlined_call_operand.hbm [shape: f32[24,128], index: 2, kind: output, shape index: {}]
  %s3 = sld [smem:[#allocation0]]
  $region45: #{tpu_custom_call.1} parent=0
    _
  %s5 = ssub.s32 1, %s3
  %s6 = scalar_select 0, %s5, %s3
  %7 = sst [smem:[#allocation2]] %s0
  $region1: #{tpu_custom_call.1} parent=0
    #allocation3 [shape = 'u8[8192]{0}', space=vmem, size = 0x2000, scoped, tag = 'input window, operand 1']
    #allocation4 [shape = 's32[2]{0}', space=sflag, size = 0x8, scoped, tag = 'scoped memory for tpu_custom_call.1']
    #allocation5 [shape = 's32[2]{0}', space=sflag, size = 0x8, scoped, tag = 'scoped memory for tpu_custom_call.1']
    #allocation6 [shape = 'u8[8192]{0}', space=vmem, size = 0x2000, scoped, tag = 'output window, operand 0']
    %8 = vsyncpa [#allocation4], 0
    %s9 = scalar_lea.sflag [#allocation4], 1
    %10 = vsyncpa %s9, 0
    %11 = vsyncpa [#allocation5], 0
    %s12 = scalar_lea.sflag [#allocation5], 1
    %13 = vsyncpa %s12, 0
    loop: start=0, step=1, limit=5
    $region2: #{tpu_custom_call.1} parent=1 // loop_pre_header
      _
    $region3: #{tpu_custom_call.1} parent=1 // loop_header
      %s15 = sphi 0, %s19
      %p16 = scmp.ge.s32.totalorder %s15, 5
      %s23 = sphi 0, %s23
      %s25 = sphi 0, %s23
      %s26 = sphi 0, %s25
      %s40 = sphi 0, %s26
      %s46 = sphi 0, %s48
      %s49 = sphi 0, %s46
      %s50 = sphi 0, %s49
      %s66 = sphi 0, %s50
      %s72 = sphi 0, %s74
      %s75 = sphi 0, %s72
      %s76 = sphi 0, %s75
      %s92 = sphi 0, %s76
    $region4: #{tpu_custom_call.1} parent=1 // loop_header_branch
      %18 = sbr.rel (%p16) target = $region8
    $region5: #{tpu_custom_call.1} parent=1 // loop_body
      %s20 = ssub.s32 %s15, 1
      %s21 = ssub.s32 %s15, 2
      %s22 = sadd.s32 %s15, 1
      %s24 = sadd.s32 %s23, 1
      %p27 = scmp.eq.s32.totalorder %s15, 2
      %p28 = scmp.ne.s32.totalorder %s23, %s25
      %p29 = scmp.eq.s32.totalorder %s15, 0
      %p30 = por %p28, %p29
      %p31 = scmp.ne.s32.totalorder %s23, %s25
      %p32 = scmp.eq.s32.totalorder %s20, 2
      %p33 = por %p31, %p32
      %p34 = scmp.ne.s32.totalorder %s25, %s26
      %p35 = scmp.eq.s32.totalorder %s20, 0
      %p36 = por %p34, %p35
      %p37 = scmp.ne.s32.totalorder %s25, %s26
      %p38 = scmp.eq.s32.totalorder %s21, 2
      %p39 = por %p37, %p38
      %p41 = scmp.ne.s32.totalorder %s26, %s40
      %p42 = scmp.eq.s32.totalorder %s21, 0
      %p43 = por %p41, %p42
      %s44 = ssub.s32 %s15, %s22
      %p45 = scmp.eq.s32.totalorder %s44, 0
      %s47 = sadd.s32 %s46, 1
      %s48 = scalar_select %p45, %s46, %s47
      %p51 = pneg %p45
      %p52 = scmp.eq.s32.totalorder %s15, 2
      %p53 = por %p51, %p52
      %p54 = scmp.ne.s32.totalorder %s46, %s49
      %p55 = scmp.eq.s32.totalorder %s15, 0
      %p56 = por %p54, %p55
      %p57 = scmp.ne.s32.totalorder %s46, %s49
      %p58 = scmp.eq.s32.totalorder %s20, 2
      %p59 = por %p57, %p58
      %p60 = scmp.ne.s32.totalorder %s49, %s50
      %p61 = scmp.eq.s32.totalorder %s20, 0
      %p62 = por %p60, %p61
      %p63 = scmp.ne.s32.totalorder %s49, %s50
      %p64 = scmp.eq.s32.totalorder %s21, 2
      %p65 = por %p63, %p64
      %p67 = scmp.ne.s32.totalorder %s50, %s66
      %p68 = scmp.eq.s32.totalorder %s21, 0
      %p69 = por %p67, %p68
      %s70 = ssub.s32 %s15, %s22
      %p71 = scmp.eq.s32.totalorder %s70, 0
      %s73 = sadd.s32 %s72, 1
      %s74 = scalar_select %p71, %s72, %s73
      %p77 = pneg %p71
      %p78 = scmp.eq.s32.totalorder %s15, 2
      %p79 = por %p77, %p78
      %p80 = scmp.ne.s32.totalorder %s72, %s75
      %p81 = scmp.eq.s32.totalorder %s15, 0
      %p82 = por %p80, %p81
      %p83 = scmp.ne.s32.totalorder %s72, %s75
      %p84 = scmp.eq.s32.totalorder %s20, 2
      %p85 = por %p83, %p84
      %p86 = scmp.ne.s32.totalorder %s75, %s76
      %p87 = scmp.eq.s32.totalorder %s20, 0
      %p88 = por %p86, %p87
      %p89 = scmp.ne.s32.totalorder %s75, %s76
      %p90 = scmp.eq.s32.totalorder %s21, 2
      %p91 = por %p89, %p90
      %p93 = scmp.ne.s32.totalorder %s76, %s92
      %p94 = scmp.eq.s32.totalorder %s21, 0
      %p95 = por %p93, %p94
      %p96 = scmp.le.s32.totalorder 1, %s15
      %p97 = scmp.lt.s32.totalorder %s15, 4
      %p98 = pnand %p96, %p97
      %p99 = pneg %p98
      // Predicated region
      $region9: #{tpu_custom_call.1} parent=5 // pred_check
        _
      $region10: #{tpu_custom_call.1} parent=5 // pred_check_branch
        %101 = sbr.rel (%p98) target = $region12
      $region11: #{tpu_custom_call.1} parent=5 // pred_region
        %s102 = ssub.s32 %s15, 1
        // Predicated region
        $region13: #{tpu_custom_call.1} parent=11 // pred_check
          %p103 = pneg %p36
        $region14: #{tpu_custom_call.1} parent=11 // pred_check_branch
          %105 = sbr.rel (%p103) target = $region16
        $region15: #{tpu_custom_call.1} parent=11 // pred_region
          _
        $region16: #{tpu_custom_call.1} parent=11 // pred_fallthru
          _
      $region12: #{tpu_custom_call.1} parent=5 // pred_fallthru
        _
      %p106 = scmp.lt.s32.totalorder %s15, 3
      // Predicated region
      $region17: #{tpu_custom_call.1} parent=5 // pred_check
        %p107 = pneg %p106
      $region18: #{tpu_custom_call.1} parent=5 // pred_check_branch
        %109 = sbr.rel (%p107) target = $region20
      $region19: #{tpu_custom_call.1} parent=5 // pred_region
        // Predicated region
        $region21: #{tpu_custom_call.1} parent=19 // pred_check
          %p110 = pneg %p56
        $region22: #{tpu_custom_call.1} parent=19 // pred_check_branch
          %112 = sbr.rel (%p110) target = $region24
        $region23: #{tpu_custom_call.1} parent=19 // pred_region
          %s113 = sand.u32 %s46, 1
          %s114 = scalar_lea.sflag [#allocation4], %s113
          %s115 = sand.u32 %s46, 1
          %s116 = smul.addr %s115, 8
          %s117 = scalar_lea.vmem [#allocation3], %s116
          %119 = vsyncadd %s114, 0
          %s120 = smul.addr %s15, 8
          %s121 = scalar_lea.hbm %s1, %s120
          %s123 = sshll.u32 %s121, 4
          %s124 = int_to_ptr.hbm [resolvable:$true] %s123
          %s125 = sshll.u32 %s117, 4
          %s126 = int_to_ptr.vmem [resolvable:$true] %s125
          %128 = dma.hbm_to_vmem [thread:$0]  %s124, 128, %s126, %s114
        $region24: #{tpu_custom_call.1} parent=19 // pred_fallthru
          _
      $region20: #{tpu_custom_call.1} parent=5 // pred_fallthru
        _
      %p129 = scmp.le.s32.totalorder 1, %s15
      %p130 = scmp.lt.s32.totalorder %s15, 4
      %p131 = pnand %p129, %p130
      %p132 = pneg %p131
      // Predicated region
      $region25: #{tpu_custom_call.1} parent=5 // pred_check
        _
      $region26: #{tpu_custom_call.1} parent=5 // pred_check_branch
        %134 = sbr.rel (%p131) target = $region28
      $region27: #{tpu_custom_call.1} parent=5 // pred_region
        %s135 = ssub.s32 %s15, 1
        %s136 = sand.u32 %s49, 1
        %s137 = scalar_lea.sflag [#allocation4], %s136
        %s138 = sand.u32 %s49, 1
        %s139 = smul.addr %s138, 8
        %s140 = scalar_lea.vmem [#allocation3], %s139
        // Predicated region
        $region29: #{tpu_custom_call.1} parent=27 // pred_check
          %p141 = pneg %p62
        $region30: #{tpu_custom_call.1} parent=27 // pred_check_branch
          %143 = sbr.rel (%p141) target = $region32
        $region31: #{tpu_custom_call.1} parent=27 // pred_region
          %145 = dma.done %s137, 128
        $region32: #{tpu_custom_call.1} parent=27 // pred_fallthru
          _
        %p146 = pneg %p36
        %p147 = pneg %p33
        %s148 = sand.u32 %s49, 1
        %s149 = scalar_lea.sflag [#allocation4], %s148
        %s150 = sand.u32 %s49, 1
        %s151 = smul.addr %s150, 8
        %s152 = scalar_lea.vmem [#allocation3], %s151
        %p153 = pneg %p62
        %p154 = pneg %p59
        %p155 = pneg %p88
        %p156 = pneg %p85
        %s157 = sand.u32 %s75, 1
        %s158 = scalar_lea.sflag [#allocation5], %s157
        %s159 = sand.u32 %s75, 1
        %s160 = smul.addr %s159, 8
        %s161 = scalar_lea.vmem [#allocation6], %s160
        %s162 = sld [smem:[#allocation2]]
        %v163 = vstv %s162
        %v164 = vmul.f32 %v163, 1.442695
        %v165 = vpow.pop %v164
        %s166 = vtos %v165
        %s167 = smin.f32 %s166, 1000.0
        %v168 = vld [vmem:[%s140] sm:$0xff]
        %v169 = vmul.f32 %v168, %v168
        %170 = vadd.xlane.f32.xlu0 %v169
        %v171 = vpop.xlane.xlu0 %170
        %v172 = vmax.f32 %v171, 1e-24
        %v173 = vrsqrt.pop %v172
        %v174 = vmul.f32 %v173, %v172
        %v175 = vmul.f32 %v174, %v173
        %v176 = vmul.f32 0.5, %v175
        %v177 = vsub.f32 1.5, %v176
        %v178 = vmul.f32 %v173, %v177
        %vm179 = vweird.f32 %v172
        %vm180 = vweird.f32 %v173
        %vm181 = vmor %vm179, %vm180
        %v182 = vsel %vm181, %v173, %v178
        %v183 = vstv %s167
        %v184 = vmul.f32 %v182, %v183
        %v185 = vmul.f32 %v168, %v184
        %186 = vst [vmem:[%s161] sm:$0xff] %v185
        %s187 = sand.u32 %s75, 1
        %s188 = scalar_lea.sflag [#allocation5], %s187
        %s189 = sand.u32 %s75, 1
        %s190 = smul.addr %s189, 8
        %s191 = scalar_lea.vmem [#allocation6], %s190
        // Predicated region
        $region33: #{tpu_custom_call.1} parent=27 // pred_check
          %p192 = pneg %p85
        $region34: #{tpu_custom_call.1} parent=27 // pred_check_branch
          %194 = sbr.rel (%p192) target = $region36
        $region35: #{tpu_custom_call.1} parent=27 // pred_region
          %196 = vsyncadd %s188, 0
          %s197 = smul.addr %s20, 8
          %s198 = scalar_lea.hbm %s2, %s197
          %s200 = sshll.u32 %s191, 4
          %s201 = int_to_ptr.vmem [resolvable:$true] %s200
          %s202 = sshll.u32 %s198, 4
          %s203 = int_to_ptr.hbm [resolvable:$true] %s202
          %205 = dma.vmem_to_hbm [thread:$0]  %s201, 128, %s203, %s188
        $region36: #{tpu_custom_call.1} parent=27 // pred_fallthru
          _
      $region28: #{tpu_custom_call.1} parent=5 // pred_fallthru
        _
      %p206 = scmp.le.s32.totalorder 2, %s15
      // Predicated region
      $region37: #{tpu_custom_call.1} parent=5 // pred_check
        %p207 = pneg %p206
      $region38: #{tpu_custom_call.1} parent=5 // pred_check_branch
        %209 = sbr.rel (%p207) target = $region40
      $region39: #{tpu_custom_call.1} parent=5 // pred_region
        %s210 = ssub.s32 %s15, 2
        // Predicated region
        $region41: #{tpu_custom_call.1} parent=39 // pred_check
          %p211 = pneg %p91
        $region42: #{tpu_custom_call.1} parent=39 // pred_check_branch
          %213 = sbr.rel (%p211) target = $region44
        $region43: #{tpu_custom_call.1} parent=39 // pred_region
          %s214 = sand.u32 %s76, 1
          %s215 = scalar_lea.sflag [#allocation5], %s214
          %s216 = sand.u32 %s76, 1
          %s217 = smul.addr %s216, 8
          %s218 = scalar_lea.vmem [#allocation6], %s217
          %220 = dma.done %s215, 128
        $region44: #{tpu_custom_call.1} parent=39 // pred_fallthru
          _
      $region40: #{tpu_custom_call.1} parent=5 // pred_fallthru
        _
    $region6: #{tpu_custom_call.1} parent=1 // loop_footer
      %s19 = sadd.s32 1, %s15
    $region7: #{tpu_custom_call.1} parent=1 // loop_footer_branch
      %14 = sbr.rel target = $region3
    $region8: #{tpu_custom_call.1} parent=1 // loop_exit
      _
    %221 = vsyncpa [#allocation4], 1
    %s222 = scalar_lea.sflag [#allocation4], 1
    %223 = vsyncpa %s222, 1
    %224 = vsyncpa [#allocation5], 1
    %s225 = scalar_lea.sflag [#allocation5], 1
    %226 = vsyncpa %s225, 1

</llo_original>
